<compile_context>
chip_gen: v6e
topology: v6e:2x2x1
jax: 0.10.0
libtpu: 0.0.40
codegen_flags: <defaults>
</compile_context>

<pallas_src>
import jax
import jax.numpy as jnp
from jax.experimental import pallas as pl
from jax.experimental.pallas import tpu as pltpu

C_IMG = 3    # image channels
C_SEG = 19   # segmentation channels
C_MSK = 1    # mask channels
C_OUT = 19   # generator output channels (segpred)


def _round_up(x, m):
    return (x + m - 1) // m * m


def seg_fwd_kernel(img_ref, seg_ref, msk_ref,
                   w_img_ref, w_seg_ref, w_msk_ref, b_ref,
                   out_ref):
    """Channel-major tiles: pixels on lanes, channels on sublanes.

    img_ref: (3, T)   seg_ref: (19, T)   msk_ref: (1, T)
    w_img_ref: (19, 3)  w_seg_ref: (19, 19)  w_msk_ref: (19, 1)  b_ref: (19, 1)
    out_ref: (19, T)
    """
    f32 = jnp.float32
    m = msk_ref[...].astype(f32)                    # (1, T)
    inv = 1.0 - m                                   # (1, T)

    # Masking stage (exact PyTorch semantics), f32 in-register.
    img_m = img_ref[...].astype(f32) * inv + m      # images*(1-m) + m   (3, T)
    seg_m = seg_ref[...].astype(f32) * inv          # segs*(1-m)        (19, T)

    # 1x1-conv stand-in generator: y = W^T @ cat(img_m, seg_m, m) + b.
    # The mask column of W is rank-1 w.r.t. pixels -> VPU broadcast-FMA,
    # folded with the bias (no K=1 MXU push).
    y = jnp.dot(w_img_ref[...].astype(f32), img_m, preferred_element_type=f32)
    y = y + jnp.dot(w_seg_ref[...].astype(f32), seg_m, preferred_element_type=f32)
    y = y + w_msk_ref[...].astype(f32) * m + b_ref[...].astype(f32)   # (19, T)

    out_ref[...] = jax.nn.sigmoid(y).astype(out_ref.dtype)


def seg_model_forward(images, segs, masks, w, b, *,
                      tile_pix=2048,
                      input_dtype=jnp.float32,
                      out_dtype=jnp.float32):
    """images: (B,3,H,W), segs: (B,19,H,W), masks: (B,1,H,W)  (NCHW, like PyTorch).
    w: (23, 19) stand-in generator weight, b: (19,) bias.
    Returns segpred: (B, 19, H, W) in `out_dtype`.

    `input_dtype=jnp.bfloat16` halves HBM traffic for the (mem-bound) kernel;
    all in-kernel math stays in f32.
    """
    B, _, H, W = images.shape
    P = H * W

    # Lane tile: big (amortize per-step overhead), multiple of 128, <= padded P.
    T = int(min(tile_pix, _round_up(P, 128)))
    P_pad = _round_up(P, T)

    # Channel-major, lane-dense layout: (B, C, P) — no NCHW<->NHWC transposes.
    img = images.reshape(B, C_IMG, P).astype(input_dtype)
    seg = segs.reshape(B, C_SEG, P).astype(input_dtype)
    msk = masks.reshape(B, C_MSK, P).astype(input_dtype)
    if P_pad != P:
        pad = ((0, 0), (0, 0), (0, P_pad - P))
        img = jnp.pad(img, pad)
        seg = jnp.pad(seg, pad)
        msk = jnp.pad(msk, pad)

    wT = jnp.asarray(w).T.astype(input_dtype)            # (19, 23) channel-major
    w_img_T = wT[:, :C_IMG]                              # (19, 3)
    w_seg_T = wT[:, C_IMG:C_IMG + C_SEG]                 # (19, 19)
    w_msk_T = wT[:, C_IMG + C_SEG:]                      # (19, 1)
    b_col = jnp.asarray(b).reshape(C_OUT, 1).astype(jnp.float32)

    grid = (B, P_pad // T)

    out = pl.pallas_call(
        seg_fwd_kernel,
        out_shape=jax.ShapeDtypeStruct((B, C_OUT, P_pad), out_dtype),
        grid_spec=pltpu.PrefetchScalarGridSpec(
            num_scalar_prefetch=0,
            grid=grid,
            in_specs=[
                # batch dim squeezed (None) -> kernel sees (C, T) tiles
                pl.BlockSpec((None, C_IMG, T), lambda bi, pj: (bi, 0, pj)),
                pl.BlockSpec((None, C_SEG, T), lambda bi, pj: (bi, 0, pj)),
                pl.BlockSpec((None, C_MSK, T), lambda bi, pj: (bi, 0, pj)),
                # tiny constant weight blocks (same block every step -> held resident)
                pl.BlockSpec((C_OUT, C_IMG), lambda bi, pj: (0, 0)),
                pl.BlockSpec((C_OUT, C_SEG), lambda bi, pj: (0, 0)),
                pl.BlockSpec((C_OUT, C_MSK), lambda bi, pj: (0, 0)),
                pl.BlockSpec((C_OUT, 1), lambda bi, pj: (0, 0)),
            ],
            out_specs=pl.BlockSpec((None, C_OUT, T), lambda bi, pj: (bi, 0, pj)),
        ),
        compiler_params=pltpu.CompilerParams(
            dimension_semantics=("parallel", "parallel"),
            vmem_limit_bytes=32 * 1024 * 1024,
        ),
    )(img, seg, msk, w_img_T, w_seg_T, w_msk_T, b_col)

    if P_pad != P:
        out = out[:, :, :P]
    return out.reshape(B, C_OUT, H, W)


def _reference(images, segs, masks, w, b):
    """Pure-JAX f32 reference of the same forward pass (mask -> concat -> 1x1 conv)."""
    segs_masked = segs * (1.0 - masks)
    images_masked = images * (1.0 - masks) + masks
    inputs = jnp.concatenate([images_masked, segs_masked, masks], axis=1)  # (B,23,H,W)
    x = jnp.transpose(inputs, (0, 2, 3, 1))                                # NHWC
    y = jnp.einsum("bhwc,co->bhwo", x, w) + b
    y = jax.nn.sigmoid(y)
    return jnp.transpose(y, (0, 3, 1, 2))


def _make_inputs(key, B, H, W):
    k_img, k_seg, k_msk = jax.random.split(key, 3)
    images = jax.random.normal(k_img, (B, C_IMG, H, W), jnp.float32)
    segs = jax.random.uniform(k_seg, (B, C_SEG, H, W), jnp.float32)
    masks = (jax.random.uniform(k_msk, (B, C_MSK, H, W)) > 0.5).astype(jnp.float32)
    return images, segs, masks


if __name__ == "__main__":
    key = jax.random.PRNGKey(0)
    k_data, k_data2, k_w, k_b = jax.random.split(key, 4)

    # Deterministic stand-in generator parameters (23 -> 19 pointwise conv).
    w = 0.1 * jax.random.normal(k_w, (C_IMG + C_SEG + C_MSK, C_OUT), jnp.float32)
    b = 0.01 * jax.random.normal(k_b, (C_OUT,), jnp.float32)

    # --- Test 1: f32, tile-divisible spatial size ---------------------------
    B, H, W = 2, 16, 16
    images, segs, masks = _make_inputs(k_data, B, H, W)
    out = seg_model_forward(images, segs, masks, w, b)
    out = jax.block_until_ready(out)
    ref = _reference(images, segs, masks, w, b)
    assert out.shape == (B, C_OUT, H, W), out.shape
    assert jnp.allclose(out, ref, atol=1e-5, rtol=1e-5), "f32 mismatch vs reference"

    # --- Test 2: bf16 HBM representation (f32 in-kernel math) ---------------
    out_bf16 = seg_model_forward(images, segs, masks, w, b,
                                 input_dtype=jnp.bfloat16)
    out_bf16 = jax.block_until_ready(out_bf16)
    assert jnp.allclose(out_bf16, ref, atol=3e-2), "bf16 mismatch vs reference"

    # --- Test 3: non-tile-divisible spatial size (padding path) -------------
    B2, H2, W2 = 1, 13, 17
    images2, segs2, masks2 = _make_inputs(k_data2, B2, H2, W2)
    out2 = seg_model_forward(images2, segs2, masks2, w, b)
    out2 = jax.block_until_ready(out2)
    ref2 = _reference(images2, segs2, masks2, w, b)
    assert out2.shape == (B2, C_OUT, H2, W2), out2.shape
    assert jnp.allclose(out2, ref2, atol=1e-5, rtol=1e-5), "padded-shape mismatch"

    print("KERNEL_OK")
</pallas_src>

<mosaic_0001>
module attributes {stable_mosaic.version = 11 : i64} {
  func.func @seg_fwd_kernel(%arg0: i32, %arg1: i32, %arg2: memref<1x3x256xf32, #tpu.memory_space<vmem>>, %arg3: memref<1x19x256xf32, #tpu.memory_space<vmem>>, %arg4: memref<1x1x256xf32, #tpu.memory_space<vmem>>, %arg5: memref<19x3xf32, #tpu.memory_space<vmem>>, %arg6: memref<19x19xf32, #tpu.memory_space<vmem>>, %arg7: memref<19x1xf32, #tpu.memory_space<vmem>>, %arg8: memref<19x1xf32, #tpu.memory_space<vmem>>, %arg9: memref<1x19x256xf32, #tpu.memory_space<vmem>>) attributes {dimension_semantics = [#tpu.dimension_semantics<parallel>, #tpu.dimension_semantics<parallel>], iteration_bounds = array<i64: 2, 1>, scalar_prefetch = 0 : i64, scratch_operands = 0 : i64, tpu.core_type = #tpu.core_type<tc>, window_params = [{transform_indices = @transform_0, window_bounds = array<i64: 1, 3, 256>}, {transform_indices = @transform_1, window_bounds = array<i64: 1, 19, 256>}, {transform_indices = @transform_2, window_bounds = array<i64: 1, 1, 256>}, {pipeline_mode = #tpu.pipeline_mode<synchronous>, transform_indices = @transform_3, window_bounds = array<i64: 19, 3>}, {pipeline_mode = #tpu.pipeline_mode<synchronous>, transform_indices = @transform_4, window_bounds = array<i64: 19, 19>}, {pipeline_mode = #tpu.pipeline_mode<synchronous>, transform_indices = @transform_5, window_bounds = array<i64: 19, 1>}, {pipeline_mode = #tpu.pipeline_mode<synchronous>, transform_indices = @transform_6, window_bounds = array<i64: 19, 1>}, {transform_indices = @transform_7, window_bounds = array<i64: 1, 19, 256>}]} {
    %c0 = arith.constant 0 : index
    %c0_0 = arith.constant 0 : index
    %c0_1 = arith.constant 0 : index
    %0 = vector.load %arg4[%c0, %c0_0, %c0_1] : memref<1x1x256xf32, #tpu.memory_space<vmem>>, vector<1x1x256xf32>
    %1 = vector.shape_cast %0 : vector<1x1x256xf32> to vector<1x256xf32>
    %cst = arith.constant 1.000000e+00 : f32
    %2 = vector.broadcast %cst : f32 to vector<1x256xf32>
    %3 = arith.subf %2, %1 : vector<1x256xf32>
    %c0_2 = arith.constant 0 : index
    %c0_3 = arith.constant 0 : index
    %c0_4 = arith.constant 0 : index
    %4 = vector.load %arg2[%c0_2, %c0_3, %c0_4] : memref<1x3x256xf32, #tpu.memory_space<vmem>>, vector<1x3x256xf32>
    %5 = vector.shape_cast %4 : vector<1x3x256xf32> to vector<3x256xf32>
    %6 = vector.broadcast %3 : vector<1x256xf32> to vector<3x256xf32>
    %7 = arith.mulf %5, %6 : vector<3x256xf32>
    %8 = vector.broadcast %1 : vector<1x256xf32> to vector<3x256xf32>
    %9 = arith.addf %7, %8 : vector<3x256xf32>
    %c0_5 = arith.constant 0 : index
    %c0_6 = arith.constant 0 : index
    %c0_7 = arith.constant 0 : index
    %10 = vector.load %arg3[%c0_5, %c0_6, %c0_7] : memref<1x19x256xf32, #tpu.memory_space<vmem>>, vector<1x19x256xf32>
    %11 = vector.shape_cast %10 : vector<1x19x256xf32> to vector<19x256xf32>
    %12 = vector.broadcast %3 : vector<1x256xf32> to vector<19x256xf32>
    %13 = arith.mulf %11, %12 : vector<19x256xf32>
    %c0_8 = arith.constant 0 : index
    %c0_9 = arith.constant 0 : index
    %14 = vector.load %arg5[%c0_8, %c0_9] : memref<19x3xf32, #tpu.memory_space<vmem>>, vector<19x3xf32>
    %cst_10 = arith.constant dense<0.000000e+00> : vector<19x256xf32>
    %15 = tpu.matmul %14, %9, %cst_10 {dimension_numbers = #tpu.dot_dimension_numbers<[1], [0], [0], [1], [0, 0, 1, 1], [], []>} : vector<19x3xf32>, vector<3x256xf32>, vector<19x256xf32> -> vector<19x256xf32>
    %c0_11 = arith.constant 0 : index
    %c0_12 = arith.constant 0 : index
    %16 = vector.load %arg6[%c0_11, %c0_12] : memref<19x19xf32, #tpu.memory_space<vmem>>, vector<19x19xf32>
    %cst_13 = arith.constant dense<0.000000e+00> : vector<19x256xf32>
    %17 = tpu.matmul %16, %13, %cst_13 {dimension_numbers = #tpu.dot_dimension_numbers<[1], [0], [0], [1], [0, 0, 1, 1], [], []>} : vector<19x19xf32>, vector<19x256xf32>, vector<19x256xf32> -> vector<19x256xf32>
    %18 = arith.addf %15, %17 : vector<19x256xf32>
    %c0_14 = arith.constant 0 : index
    %c0_15 = arith.constant 0 : index
    %19 = vector.load %arg7[%c0_14, %c0_15] : memref<19x1xf32, #tpu.memory_space<vmem>>, vector<19x1xf32>
    %20 = vector.broadcast %19 : vector<19x1xf32> to vector<19x256xf32>
    %21 = vector.broadcast %1 : vector<1x256xf32> to vector<19x256xf32>
    %22 = arith.mulf %20, %21 : vector<19x256xf32>
    %23 = arith.addf %18, %22 : vector<19x256xf32>
    %c0_16 = arith.constant 0 : index
    %c0_17 = arith.constant 0 : index
    %24 = vector.load %arg8[%c0_16, %c0_17] : memref<19x1xf32, #tpu.memory_space<vmem>>, vector<19x1xf32>
    %25 = vector.broadcast %24 : vector<19x1xf32> to vector<19x256xf32>
    %26 = arith.addf %23, %25 : vector<19x256xf32>
    %27 = arith.negf %26 : vector<19x256xf32>
    %28 = math.exp %27 : vector<19x256xf32>
    %cst_18 = arith.constant 1.000000e+00 : f32
    %29 = vector.broadcast %cst_18 : f32 to vector<19x256xf32>
    %30 = arith.addf %29, %28 : vector<19x256xf32>
    %31 = arith.divf %29, %30 : vector<19x256xf32>
    %c0_19 = arith.constant 0 : index
    %c0_20 = arith.constant 0 : index
    %c0_21 = arith.constant 0 : index
    %32 = vector.load %arg9[%c0_19, %c0_20, %c0_21] : memref<1x19x256xf32, #tpu.memory_space<vmem>>, vector<1x19x256xf32>
    %33 = vector.shape_cast %32 : vector<1x19x256xf32> to vector<19x256xf32>
    %34 = vector.shape_cast %31 : vector<19x256xf32> to vector<1x19x256xf32>
    tpu.vector_store %arg9[%c0_19, %c0_20, %c0_21], %34 {strides = array<i32>} : memref<1x19x256xf32, #tpu.memory_space<vmem>>, vector<1x19x256xf32>,
    return
  }
  func.func @transform_0(%arg0: i32, %arg1: i32) -> (i32, i32, i32) {
    %c0_i32 = arith.constant 0 : i32
    %c0_i32_0 = arith.constant 0 : i32
    return %arg0, %c0_i32, %arg1 : i32, i32, i32
  }
  func.func @transform_1(%arg0: i32, %arg1: i32) -> (i32, i32, i32) {
    %c0_i32 = arith.constant 0 : i32
    %c0_i32_0 = arith.constant 0 : i32
    return %arg0, %c0_i32, %arg1 : i32, i32, i32
  }
  func.func @transform_2(%arg0: i32, %arg1: i32) -> (i32, i32, i32) {
    %c0_i32 = arith.constant 0 : i32
    %c0_i32_0 = arith.constant 0 : i32
    return %arg0, %c0_i32, %arg1 : i32, i32, i32
  }
  func.func @transform_3(%arg0: i32, %arg1: i32) -> (i32, i32) {
    %c0_i32 = arith.constant 0 : i32
    %c0_i32_0 = arith.constant 0 : i32
    %c0_i32_1 = arith.constant 0 : i32
    return %c0_i32, %c0_i32_0 : i32, i32
  }
  func.func @transform_4(%arg0: i32, %arg1: i32) -> (i32, i32) {
    %c0_i32 = arith.constant 0 : i32
    %c0_i32_0 = arith.constant 0 : i32
    %c0_i32_1 = arith.constant 0 : i32
    return %c0_i32, %c0_i32_0 : i32, i32
  }
  func.func @transform_5(%arg0: i32, %arg1: i32) -> (i32, i32) {
    %c0_i32 = arith.constant 0 : i32
    %c0_i32_0 = arith.constant 0 : i32
    %c0_i32_1 = arith.constant 0 : i32
    return %c0_i32, %c0_i32_0 : i32, i32
  }
  func.func @transform_6(%arg0: i32, %arg1: i32) -> (i32, i32) {
    %c0_i32 = arith.constant 0 : i32
    %c0_i32_0 = arith.constant 0 : i32
    %c0_i32_1 = arith.constant 0 : i32
    return %c0_i32, %c0_i32_0 : i32, i32
  }
  func.func @transform_7(%arg0: i32, %arg1: i32) -> (i32, i32, i32) {
    %c0_i32 = arith.constant 0 : i32
    %c0_i32_0 = arith.constant 0 : i32
    return %arg0, %c0_i32, %arg1 : i32, i32, i32
  }
}

</mosaic_0001>

<llo_original>
// kernel: tpu_custom_call.1
$region0: #{tpu_custom_call.1}
  #allocation0 [shape = 'u32[]', space=smem, size = 0x4, offset = 0x4, fixed_abs, tag = 'smem constant byte address 0x4 - core index']
  #allocation1 [shape = 'u32[144,128]{1,0:T(1,128)}', space=vmem, size = 0x12000, scoped, tag = 'internal scratch']
  %s0 = inlined_call_operand.vmem [shape: f32[2,3,256], index: 0, kind: input, shape index: {}]
  %s1 = inlined_call_operand.vmem [shape: f32[2,19,256], index: 1, kind: input, shape index: {}]
  %s2 = inlined_call_operand.vmem [shape: f32[2,1,256], index: 2, kind: input, shape index: {}]
  %s3 = inlined_call_operand.vmem [shape: f32[19,3], index: 3, kind: input, shape index: {}]
  %s4 = inlined_call_operand.vmem [shape: f32[19,19], index: 4, kind: input, shape index: {}]
  %s5 = inlined_call_operand.vmem [shape: f32[19,1], index: 5, kind: input, shape index: {}]
  %s6 = inlined_call_operand.vmem [shape: f32[19,1], index: 6, kind: input, shape index: {}]
  %s7 = inlined_call_operand.vmem [shape: f32[2,19,256], index: 7, kind: output, shape index: {}]
  %s8 = sld [smem:[#allocation0]]
  $region61: #{tpu_custom_call.1} parent=0
    _
  %s10 = ssub.s32 1, %s8
  %s11 = scalar_select 0, %s10, %s8
  loop: start=0, step=1, limit=4
  $region2: #{tpu_custom_call.1} parent=0 // loop_pre_header
    _
  $region3: #{tpu_custom_call.1} parent=0 // loop_header
    %s13 = sphi 0, %s17
    %p14 = scmp.ge.s32.totalorder %s13, 4
    %s20 = sphi 0, %s32
    %s21 = sphi 0, %s28
    %s22 = sphi 0, %s20
    %s23 = sphi 0, %s21
    %s24 = sphi 0, %s22
    %s25 = sphi 0, %s23
    %s37 = sphi 0, %s39
    %s40 = sphi 0, %s37
    %s41 = sphi 0, %s40
    %s57 = sphi 0, %s41
    %s65 = sphi 0, %s67
    %s68 = sphi 0, %s65
    %s69 = sphi 0, %s68
    %s85 = sphi 0, %s69
    %s93 = sphi 0, %s95
    %s96 = sphi 0, %s93
    %s97 = sphi 0, %s96
    %s113 = sphi 0, %s97
    %s117 = sphi 0, %s117
    %s119 = sphi 0, %s117
    %s120 = sphi 0, %s119
    %s134 = sphi 0, %s120
    %s138 = sphi 0, %s138
    %s140 = sphi 0, %s138
    %s141 = sphi 0, %s140
    %s155 = sphi 0, %s141
    %s159 = sphi 0, %s159
    %s161 = sphi 0, %s159
    %s162 = sphi 0, %s161
    %s176 = sphi 0, %s162
    %s180 = sphi 0, %s180
    %s182 = sphi 0, %s180
    %s183 = sphi 0, %s182
    %s197 = sphi 0, %s183
    %s205 = sphi 0, %s207
    %s208 = sphi 0, %s205
    %s209 = sphi 0, %s208
    %s225 = sphi 0, %s209
  $region4: #{tpu_custom_call.1} parent=0 // loop_header_branch
    %16 = sbr.rel (%p14) target = $region8
  $region5: #{tpu_custom_call.1} parent=0 // loop_body
    %s18 = ssub.s32 %s13, 1
    %s19 = ssub.s32 %s13, 2
    %s26 = sadd.s32 1, %s21
    %p27 = scmp.ge.s32.totalorder %s26, 1
    %s28 = scalar_select %p27, 0, %s26
    %s29 = sadd.s32 1, %s20
    %s30 = scalar_select %p27, %s29, %s20
    %p31 = scmp.ge.s32.totalorder %s30, 2
    %s32 = scalar_select %p31, 0, %s30
    %s33 = ssub.s32 %s20, %s32
    %s34 = ssub.s32 %s21, %s28
    %s35 = sor.u32 %s33, %s34
    %p36 = scmp.eq.s32.totalorder %s35, 0
    %s38 = sadd.s32 %s37, 1
    %s39 = scalar_select %p36, %s37, %s38
    %p42 = pneg %p36
    %p43 = scmp.eq.s32.totalorder %s13, 1
    %p44 = por %p42, %p43
    %p45 = scmp.ne.s32.totalorder %s37, %s40
    %p46 = scmp.eq.s32.totalorder %s13, 0
    %p47 = por %p45, %p46
    %p48 = scmp.ne.s32.totalorder %s37, %s40
    %p49 = scmp.eq.s32.totalorder %s18, 1
    %p50 = por %p48, %p49
    %p51 = scmp.ne.s32.totalorder %s40, %s41
    %p52 = scmp.eq.s32.totalorder %s18, 0
    %p53 = por %p51, %p52
    %p54 = scmp.ne.s32.totalorder %s40, %s41
    %p55 = scmp.eq.s32.totalorder %s19, 1
    %p56 = por %p54, %p55
    %p58 = scmp.ne.s32.totalorder %s41, %s57
    %p59 = scmp.eq.s32.totalorder %s19, 0
    %p60 = por %p58, %p59
    %s61 = ssub.s32 %s20, %s32
    %s62 = ssub.s32 %s21, %s28
    %s63 = sor.u32 %s61, %s62
    %p64 = scmp.eq.s32.totalorder %s63, 0
    %s66 = sadd.s32 %s65, 1
    %s67 = scalar_select %p64, %s65, %s66
    %p70 = pneg %p64
    %p71 = scmp.eq.s32.totalorder %s13, 1
    %p72 = por %p70, %p71
    %p73 = scmp.ne.s32.totalorder %s65, %s68
    %p74 = scmp.eq.s32.totalorder %s13, 0
    %p75 = por %p73, %p74
    %p76 = scmp.ne.s32.totalorder %s65, %s68
    %p77 = scmp.eq.s32.totalorder %s18, 1
    %p78 = por %p76, %p77
    %p79 = scmp.ne.s32.totalorder %s68, %s69
    %p80 = scmp.eq.s32.totalorder %s18, 0
    %p81 = por %p79, %p80
    %p82 = scmp.ne.s32.totalorder %s68, %s69
    %p83 = scmp.eq.s32.totalorder %s19, 1
    %p84 = por %p82, %p83
    %p86 = scmp.ne.s32.totalorder %s69, %s85
    %p87 = scmp.eq.s32.totalorder %s19, 0
    %p88 = por %p86, %p87
    %s89 = ssub.s32 %s20, %s32
    %s90 = ssub.s32 %s21, %s28
    %s91 = sor.u32 %s89, %s90
    %p92 = scmp.eq.s32.totalorder %s91, 0
    %s94 = sadd.s32 %s93, 1
    %s95 = scalar_select %p92, %s93, %s94
    %p98 = pneg %p92
    %p99 = scmp.eq.s32.totalorder %s13, 1
    %p100 = por %p98, %p99
    %p101 = scmp.ne.s32.totalorder %s93, %s96
    %p102 = scmp.eq.s32.totalorder %s13, 0
    %p103 = por %p101, %p102
    %p104 = scmp.ne.s32.totalorder %s93, %s96
    %p105 = scmp.eq.s32.totalorder %s18, 1
    %p106 = por %p104, %p105
    %p107 = scmp.ne.s32.totalorder %s96, %s97
    %p108 = scmp.eq.s32.totalorder %s18, 0
    %p109 = por %p107, %p108
    %p110 = scmp.ne.s32.totalorder %s96, %s97
    %p111 = scmp.eq.s32.totalorder %s19, 1
    %p112 = por %p110, %p111
    %p114 = scmp.ne.s32.totalorder %s97, %s113
    %p115 = scmp.eq.s32.totalorder %s19, 0
    %p116 = por %p114, %p115
    %s118 = sadd.s32 %s117, 1
    %p121 = scmp.eq.s32.totalorder %s13, 1
    %p122 = scmp.ne.s32.totalorder %s117, %s119
    %p123 = scmp.eq.s32.totalorder %s13, 0
    %p124 = por %p122, %p123
    %p125 = scmp.ne.s32.totalorder %s117, %s119
    %p126 = scmp.eq.s32.totalorder %s18, 1
    %p127 = por %p125, %p126
    %p128 = scmp.ne.s32.totalorder %s119, %s120
    %p129 = scmp.eq.s32.totalorder %s18, 0
    %p130 = por %p128, %p129
    %p131 = scmp.ne.s32.totalorder %s119, %s120
    %p132 = scmp.eq.s32.totalorder %s19, 1
    %p133 = por %p131, %p132
    %p135 = scmp.ne.s32.totalorder %s120, %s134
    %p136 = scmp.eq.s32.totalorder %s19, 0
    %p137 = por %p135, %p136
    %s139 = sadd.s32 %s138, 1
    %p142 = scmp.eq.s32.totalorder %s13, 1
    %p143 = scmp.ne.s32.totalorder %s138, %s140
    %p144 = scmp.eq.s32.totalorder %s13, 0
    %p145 = por %p143, %p144
    %p146 = scmp.ne.s32.totalorder %s138, %s140
    %p147 = scmp.eq.s32.totalorder %s18, 1
    %p148 = por %p146, %p147
    %p149 = scmp.ne.s32.totalorder %s140, %s141
    %p150 = scmp.eq.s32.totalorder %s18, 0
    %p151 = por %p149, %p150
    %p152 = scmp.ne.s32.totalorder %s140, %s141
    %p153 = scmp.eq.s32.totalorder %s19, 1
    %p154 = por %p152, %p153
    %p156 = scmp.ne.s32.totalorder %s141, %s155
    %p157 = scmp.eq.s32.totalorder %s19, 0
    %p158 = por %p156, %p157
    %s160 = sadd.s32 %s159, 1
    %p163 = scmp.eq.s32.totalorder %s13, 1
    %p164 = scmp.ne.s32.totalorder %s159, %s161
    %p165 = scmp.eq.s32.totalorder %s13, 0
    %p166 = por %p164, %p165
    %p167 = scmp.ne.s32.totalorder %s159, %s161
    %p168 = scmp.eq.s32.totalorder %s18, 1
    %p169 = por %p167, %p168
    %p170 = scmp.ne.s32.totalorder %s161, %s162
    %p171 = scmp.eq.s32.totalorder %s18, 0
    %p172 = por %p170, %p171
    %p173 = scmp.ne.s32.totalorder %s161, %s162
    %p174 = scmp.eq.s32.totalorder %s19, 1
    %p175 = por %p173, %p174
    %p177 = scmp.ne.s32.totalorder %s162, %s176
    %p178 = scmp.eq.s32.totalorder %s19, 0
    %p179 = por %p177, %p178
    %s181 = sadd.s32 %s180, 1
    %p184 = scmp.eq.s32.totalorder %s13, 1
    %p185 = scmp.ne.s32.totalorder %s180, %s182
    %p186 = scmp.eq.s32.totalorder %s13, 0
    %p187 = por %p185, %p186
    %p188 = scmp.ne.s32.totalorder %s180, %s182
    %p189 = scmp.eq.s32.totalorder %s18, 1
    %p190 = por %p188, %p189
    %p191 = scmp.ne.s32.totalorder %s182, %s183
    %p192 = scmp.eq.s32.totalorder %s18, 0
    %p193 = por %p191, %p192
    %p194 = scmp.ne.s32.totalorder %s182, %s183
    %p195 = scmp.eq.s32.totalorder %s19, 1
    %p196 = por %p194, %p195
    %p198 = scmp.ne.s32.totalorder %s183, %s197
    %p199 = scmp.eq.s32.totalorder %s19, 0
    %p200 = por %p198, %p199
    %s201 = ssub.s32 %s20, %s32
    %s202 = ssub.s32 %s21, %s28
    %s203 = sor.u32 %s201, %s202
    %p204 = scmp.eq.s32.totalorder %s203, 0
    %s206 = sadd.s32 %s205, 1
    %s207 = scalar_select %p204, %s205, %s206
    %p210 = pneg %p204
    %p211 = scmp.eq.s32.totalorder %s13, 1
    %p212 = por %p210, %p211
    %p213 = scmp.ne.s32.totalorder %s205, %s208
    %p214 = scmp.eq.s32.totalorder %s13, 0
    %p215 = por %p213, %p214
    %p216 = scmp.ne.s32.totalorder %s205, %s208
    %p217 = scmp.eq.s32.totalorder %s18, 1
    %p218 = por %p216, %p217
    %p219 = scmp.ne.s32.totalorder %s208, %s209
    %p220 = scmp.eq.s32.totalorder %s18, 0
    %p221 = por %p219, %p220
    %p222 = scmp.ne.s32.totalorder %s208, %s209
    %p223 = scmp.eq.s32.totalorder %s19, 1
    %p224 = por %p222, %p223
    %p226 = scmp.ne.s32.totalorder %s209, %s225
    %p227 = scmp.eq.s32.totalorder %s19, 0
    %p228 = por %p226, %p227
    %p229 = scmp.le.s32.totalorder 1, %s13
    %p230 = scmp.lt.s32.totalorder %s13, 3
    %p231 = pnand %p229, %p230
    %p232 = pneg %p231
    // Predicated region
    $region9: #{tpu_custom_call.1} parent=5 // pred_check
      _
    $region10: #{tpu_custom_call.1} parent=5 // pred_check_branch
      %234 = sbr.rel (%p231) target = $region12
    $region11: #{tpu_custom_call.1} parent=5 // pred_region
      %s235 = ssub.s32 %s13, 1
      // Predicated region
      $region13: #{tpu_custom_call.1} parent=11 // pred_check
        %p236 = pneg %p130
      $region14: #{tpu_custom_call.1} parent=11 // pred_check_branch
        %238 = sbr.rel (%p236) target = $region16
      $region15: #{tpu_custom_call.1} parent=11 // pred_region
        _
      $region16: #{tpu_custom_call.1} parent=11 // pred_fallthru
        _
      // Predicated region
      $region17: #{tpu_custom_call.1} parent=11 // pred_check
        %p239 = pneg %p151
      $region18: #{tpu_custom_call.1} parent=11 // pred_check_branch
        %241 = sbr.rel (%p239) target = $region20
      $region19: #{tpu_custom_call.1} parent=11 // pred_region
        _
      $region20: #{tpu_custom_call.1} parent=11 // pred_fallthru
        _
      // Predicated region
      $region21: #{tpu_custom_call.1} parent=11 // pred_check
        %p242 = pneg %p172
      $region22: #{tpu_custom_call.1} parent=11 // pred_check_branch
        %244 = sbr.rel (%p242) target = $region24
      $region23: #{tpu_custom_call.1} parent=11 // pred_region
        _
      $region24: #{tpu_custom_call.1} parent=11 // pred_fallthru
        _
      // Predicated region
      $region25: #{tpu_custom_call.1} parent=11 // pred_check
        %p245 = pneg %p193
      $region26: #{tpu_custom_call.1} parent=11 // pred_check_branch
        %247 = sbr.rel (%p245) target = $region28
      $region27: #{tpu_custom_call.1} parent=11 // pred_region
        _
      $region28: #{tpu_custom_call.1} parent=11 // pred_fallthru
        _
    $region12: #{tpu_custom_call.1} parent=5 // pred_fallthru
      _
    %p248 = scmp.lt.s32.totalorder %s13, 2
    // Predicated region
    $region29: #{tpu_custom_call.1} parent=5 // pred_check
      %p249 = pneg %p248
    $region30: #{tpu_custom_call.1} parent=5 // pred_check_branch
      %251 = sbr.rel (%p249) target = $region32
    $region31: #{tpu_custom_call.1} parent=5 // pred_region
      // Predicated region
      $region33: #{tpu_custom_call.1} parent=31 // pred_check
        %p252 = pneg %p47
      $region34: #{tpu_custom_call.1} parent=31 // pred_check_branch
        %254 = sbr.rel (%p252) target = $region36
      $region35: #{tpu_custom_call.1} parent=31 // pred_region
        %s255 = smul.u32 2, %s21
        %p256 = scmp.lt.s32.totalorder %s20, 1
        %s257 = scalar_select %p256, %s20, 1
        %p258 = scmp.lt.s32.totalorder %s255, 1
        %s259 = scalar_select %p258, %s255, 1
        %s260 = smul.addr %s257, 2
        %s261 = sadd.s32 %s259, %s260
        %s262 = smul.addr %s261, 4
        %s263 = scalar_lea.vmem %s0, %s262
        %s264 = smul.u32 2, %s21
      $region36: #{tpu_custom_call.1} parent=31 // pred_fallthru
        _
      // Predicated region
      $region37: #{tpu_custom_call.1} parent=31 // pred_check
        %p265 = pneg %p75
      $region38: #{tpu_custom_call.1} parent=31 // pred_check_branch
        %267 = sbr.rel (%p265) target = $region40
      $region39: #{tpu_custom_call.1} parent=31 // pred_region
        %s268 = smul.u32 2, %s21
        %p269 = scmp.lt.s32.totalorder %s20, 1
        %s270 = scalar_select %p269, %s20, 1
        %p271 = scmp.lt.s32.totalorder %s268, 1
        %s272 = scalar_select %p271, %s268, 1
        %s273 = smul.addr %s270, 6
        %s274 = sadd.s32 %s272, %s273
        %s275 = smul.addr %s274, 8
        %s276 = scalar_lea.vmem %s1, %s275
        %s277 = smul.u32 2, %s21
      $region40: #{tpu_custom_call.1} parent=31 // pred_fallthru
        _
      // Predicated region
      $region41: #{tpu_custom_call.1} parent=31 // pred_check
        %p278 = pneg %p103
      $region42: #{tpu_custom_call.1} parent=31 // pred_check_branch
        %280 = sbr.rel (%p278) target = $region44
      $region43: #{tpu_custom_call.1} parent=31 // pred_region
        %s281 = smul.u32 2, %s21
        %p282 = scmp.lt.s32.totalorder %s20, 1
        %s283 = scalar_select %p282, %s20, 1
        %p284 = scmp.lt.s32.totalorder %s281, 1
        %s285 = scalar_select %p284, %s281, 1
        %s286 = smul.addr %s283, 2
        %s287 = sadd.s32 %s285, %s286
        %s288 = scalar_lea.vmem %s2, %s287
        %s289 = smul.u32 2, %s21
      $region44: #{tpu_custom_call.1} parent=31 // pred_fallthru
        _
    $region32: #{tpu_custom_call.1} parent=5 // pred_fallthru
      _
    %p290 = scmp.le.s32.totalorder 1, %s13
    %p291 = scmp.lt.s32.totalorder %s13, 3
    %p292 = pnand %p290, %p291
    %p293 = pneg %p292
    // Predicated region
    $region45: #{tpu_custom_call.1} parent=5 // pred_check
      _
    $region46: #{tpu_custom_call.1} parent=5 // pred_check_branch
      %295 = sbr.rel (%p292) target = $region48
    $region47: #{tpu_custom_call.1} parent=5 // pred_region
      %s296 = ssub.s32 %s13, 1
      %s297 = smul.u32 2, %s23
      %p298 = scmp.lt.s32.totalorder %s22, 1
      %s299 = scalar_select %p298, %s22, 1
      %p300 = scmp.lt.s32.totalorder %s297, 1
      %s301 = scalar_select %p300, %s297, 1
      %s302 = smul.addr %s299, 2
      %s303 = sadd.s32 %s301, %s302
      %s304 = smul.addr %s303, 4
      %s305 = scalar_lea.vmem %s0, %s304
      %p306 = pneg %p53
      %p307 = pneg %p50
      %s308 = smul.u32 2, %s23
      %p309 = scmp.lt.s32.totalorder %s22, 1
      %s310 = scalar_select %p309, %s22, 1
      %p311 = scmp.lt.s32.totalorder %s308, 1
      %s312 = scalar_select %p311, %s308, 1
      %s313 = smul.addr %s310, 6
      %s314 = sadd.s32 %s312, %s313
      %s315 = smul.addr %s314, 8
      %s316 = scalar_lea.vmem %s1, %s315
      %p317 = pneg %p81
      %p318 = pneg %p78
      %s319 = smul.u32 2, %s23
      %p320 = scmp.lt.s32.totalorder %s22, 1
      %s321 = scalar_select %p320, %s22, 1
      %p322 = scmp.lt.s32.totalorder %s319, 1
      %s323 = scalar_select %p322, %s319, 1
      %s324 = smul.addr %s321, 2
      %s325 = sadd.s32 %s323, %s324
      %s326 = scalar_lea.vmem %s2, %s325
      %p327 = pneg %p109
      %p328 = pneg %p106
      %p329 = pneg %p130
      %p330 = pneg %p127
      %p331 = pneg %p151
      %p332 = pneg %p148
      %p333 = pneg %p172
      %p334 = pneg %p169
      %p335 = pneg %p193
      %p336 = pneg %p190
      %p337 = pneg %p221
      %p338 = pneg %p218
      %s339 = smul.u32 2, %s23
      %p340 = scmp.lt.s32.totalorder %s22, 1
      %s341 = scalar_select %p340, %s22, 1
      %p342 = scmp.lt.s32.totalorder %s339, 1
      %s343 = scalar_select %p342, %s339, 1
      %s344 = smul.addr %s341, 6
      %s345 = sadd.s32 %s343, %s344
      %s346 = smul.addr %s345, 8
      %s347 = scalar_lea.vmem %s7, %s346
      %s348 = smul.u32 2, %s23
      %p349 = scmp.lt.s32.totalorder %s22, 1
      %s350 = scalar_select %p349, %s22, 1
      %p351 = scmp.lt.s32.totalorder %s348, 1
      %s352 = scalar_select %p351, %s348, 1
      %s353 = smul.addr %s350, 2
      %s354 = sadd.s32 %s352, %s353
      %s355 = smul.addr %s354, 4
      %s356 = scalar_lea.vmem %s0, %s355
      %s357 = smul.u32 2, %s23
      %s358 = smul.u32 2, %s23
      %p359 = scmp.lt.s32.totalorder %s22, 1
      %s360 = scalar_select %p359, %s22, 1
      %p361 = scmp.lt.s32.totalorder %s358, 1
      %s362 = scalar_select %p361, %s358, 1
      %s363 = smul.addr %s360, 6
      %s364 = sadd.s32 %s362, %s363
      %s365 = smul.addr %s364, 8
      %s366 = scalar_lea.vmem %s1, %s365
      %s367 = smul.u32 2, %s23
      %s368 = smul.u32 2, %s23
      %p369 = scmp.lt.s32.totalorder %s22, 1
      %s370 = scalar_select %p369, %s22, 1
      %p371 = scmp.lt.s32.totalorder %s368, 1
      %s372 = scalar_select %p371, %s368, 1
      %s373 = smul.addr %s370, 2
      %s374 = sadd.s32 %s372, %s373
      %s375 = scalar_lea.vmem %s2, %s374
      %s376 = smul.u32 2, %s23
      %s377 = smul.u32 2, %s23
      %p378 = scmp.lt.s32.totalorder %s22, 1
      %s379 = scalar_select %p378, %s22, 1
      %p380 = scmp.lt.s32.totalorder %s377, 1
      %s381 = scalar_select %p380, %s377, 1
      %s382 = smul.addr %s379, 6
      %s383 = sadd.s32 %s381, %s382
      %s384 = smul.addr %s383, 8
      %s385 = scalar_lea.vmem %s7, %s384
      %s386 = smul.u32 2, %s23
      %v387 = vld [vmem:[%s375] sm:$0x3]
      %v388 = vsub.f32 1.0, %v387
      %v389 = vld [vmem:[%s356] sm:$0x77]
      %v391 = vlaneseq
      %v392 = vshrl.u32 %v391, 7
      %v393 = vsub.s32 0, %v392
      %v394 = vrot.slane %v388, %v393
      %v395 = vlaneseq
      %v396 = vshrl.u32 %v395, 7
      %v397 = vsub.s32 1, %v396
      %v398 = vrot.slane %v388, %v397
      %v399 = vcombine.low %v394, %v398
      %v401 = vmul.f32 %v389, %v399
      %v403 = vlaneseq
      %v404 = vshrl.u32 %v403, 7
      %v405 = vsub.s32 0, %v404
      %v406 = vrot.slane %v387, %v405
      %v407 = vlaneseq
      %v408 = vshrl.u32 %v407, 7
      %v409 = vsub.s32 1, %v408
      %v410 = vrot.slane %v387, %v409
      %v411 = vcombine.low %v406, %v410
      %v413 = vadd.f32 %v401, %v411
      %v414 = vld [vmem:[%s366] sm:$0xff]
      %v415 = vld [vmem:[%s366 + $0x8] sm:$0xff]
      %v416 = vld [vmem:[%s366 + $0x10] sm:$0xff]
      %v417 = vld [vmem:[%s366 + $0x18] sm:$0xff]
      %v418 = vld [vmem:[%s366 + $0x20] sm:$0x7]
      %v419 = vld [vmem:[%s366 + $0x28] sm:$0x7]
      %v422 = vmul.f32 %v414, %v394
      %v423 = vmul.f32 %v415, %v398
      %v424 = vmul.f32 %v416, %v394
      %v425 = vmul.f32 %v417, %v398
      %v426 = vmul.f32 %v418, %v394
      %v427 = vmul.f32 %v419, %v398
      %v428 = vld [vmem:[%s3] sm:$0xff]
      %v429 = vld [vmem:[%s3 + $0x8] sm:$0xff]
      %v430 = vld [vmem:[%s3 + $0x10] sm:$0x7]
      %v431 = vld [vmem:[%s4] sm:$0xff]
      %v432 = vld [vmem:[%s4 + $0x8] sm:$0xff]
      %v433 = vld [vmem:[%s4 + $0x10] sm:$0x7]
      %vm434 = vcmask 154624
      %v436 = vsel %vm434, %v431, 0
      %v439 = vsel %vm434, %v432, 0
      %v442 = vsel %vm434, %v433, 0
      %vm444 = vcmask 1042432
      %v446 = vsel %vm444, %v426, 0
      %v449 = vsel %vm444, %v427, 0
      %451 = vmatprep.subr.mxu0 0.0
      %452 = vmatpush1.msra.mxu0 0.0
      %453 = vmatprep.subr.mxu0 0.0
      %454 = vmatpush1.msra.mxu0 0.0
      %455 = vmatprep.subr.mxu0 0.0
      %456 = vmatpush1.msra.mxu0 0.0
      %457 = vmatprep.subr.mxu0 0.0
      %458 = vmatpush1.msra.mxu0 0.0
      %459 = vmatprep.subr.mxu0 0.0
      %460 = vmatpush1.msra.mxu0 0.0
      %461 = vmatprep.subr.mxu0 0.0
      %462 = vmatpush1.msra.mxu0 0.0
      %463 = vmatprep.subr.mxu0 0.0
      %464 = vmatpush1.msra.mxu0 0.0
      %465 = vmatprep.subr.mxu0 0.0
      %466 = vmatpush1.msra.mxu0 0.0
      %467 = vmatprep.subr.mxu0 0.0
      %468 = vmatpush1.msra.mxu0 0.0
      %469 = vmatprep.subr.mxu0 0.0
      %470 = vmatpush1.msra.mxu0 0.0
      %471 = vmatprep.subr.mxu0 0.0
      %472 = vmatpush1.msra.mxu0 0.0
      %473 = vmatprep.subr.mxu0 0.0
      %474 = vmatpush1.msra.mxu0 0.0
      %475 = vmatprep.subr.mxu0 0.0
      %476 = vmatpush1.msra.mxu0 0.0
      %477 = vmatprep.subr.mxu0 %v449
      %478 = vmatpush1.msra.mxu0 %v446
      %479 = vmatprep.subr.mxu0 %v425
      %480 = vmatpush1.msra.mxu0 %v424
      %481 = vmatprep.subr.mxu0 %v423
      %482 = vmatpush1.msra.mxu0 %v422
      %483 = vmatprep.subr.mxu0 0.0
      %484 = vmatpush2.msra.mxu0 0.0
      %485 = vmatprep.subr.mxu0 0.0
      %486 = vmatpush2.msra.mxu0 0.0
      %487 = vmatprep.subr.mxu0 0.0
      %488 = vmatpush2.msra.mxu0 0.0
      %489 = vmatprep.subr.mxu0 0.0
      %490 = vmatpush2.msra.mxu0 0.0
      %491 = vmatprep.subr.mxu0 0.0
      %492 = vmatpush2.msra.mxu0 0.0
      %493 = vmatprep.subr.mxu0 0.0
      %494 = vmatpush2.msra.mxu0 0.0
      %495 = vmatprep.subr.mxu0 0.0
      %496 = vmatpush2.msra.mxu0 0.0
      %497 = vmatprep.subr.mxu0 0.0
      %498 = vmatpush2.msra.mxu0 0.0
      %499 = vmatprep.subr.mxu0 0.0
      %500 = vmatpush2.msra.mxu0 0.0
      %501 = vmatprep.subr.mxu0 0.0
      %502 = vmatpush2.msra.mxu0 0.0
      %503 = vmatprep.subr.mxu0 0.0
      %504 = vmatpush2.msra.mxu0 0.0
      %505 = vmatprep.subr.mxu0 0.0
      %506 = vmatpush2.msra.mxu0 0.0
      %507 = vmatprep.subr.mxu0 0.0
      %508 = vmatpush2.msra.mxu0 0.0
      %509 = vmatprep.subr.mxu0 0.0
      %510 = vmatpush2.msra.mxu0 0.0
      %511 = vmatprep.subr.mxu0 0.0
      %512 = vmatpush2.msra.mxu0 0.0
      %513 = vmatprep.subr.mxu0 0.0
      %514 = vmatpush2.msra.mxu0 0.0
      %515 = vmatprep.mubr.f32.mxu0 0.0
      %516 = vmatmul.mubr.f32.gmra.mxu0 %v436
      %v517 = vpop.f32.mrf.mxu0
      %v518 = vadd.f32 0.0, %v517
      %v519 = vpop.f32.mrf.mxu0
      %v520 = vadd.f32 0.0, %v519
      %521 = vmatprep.mubr.f32.mxu0 0.0
      %522 = vmatmul.mubr.f32.gmra.mxu0 %v439
      %v523 = vpop.f32.mrf.mxu0
      %v524 = vadd.f32 0.0, %v523
      %v525 = vpop.f32.mrf.mxu0
      %v526 = vadd.f32 0.0, %v525
      %527 = vmatprep.mubr.f32.mxu0 0.0
      %528 = vmatmul.mubr.f32.gmra.mxu0 %v442
      %v529 = vpop.f32.mrf.mxu0
      %v530 = vadd.f32 0.0, %v529
      %v531 = vpop.f32.mrf.mxu0
      %v532 = vadd.f32 0.0, %v531
      %533 = vdwg.mxu0
      %v535 = vcombine.high %v413, %v413
      %vm536 = vcmask 23552
      %v538 = vsel %vm536, %v428, 0
      %v541 = vsel %vm536, %v429, 0
      %v544 = vsel %vm536, %v430, 0
      %v546 = vsel %vm444, %v413, 0
      %v548 = vsel %vm444, %v535, 0
      %550 = vmatprep.subr.mxu0 0.0
      %551 = vmatpush1.msra.mxu0 0.0
      %552 = vmatprep.subr.mxu0 0.0
      %553 = vmatpush1.msra.mxu0 0.0
      %554 = vmatprep.subr.mxu0 0.0
      %555 = vmatpush1.msra.mxu0 0.0
      %556 = vmatprep.subr.mxu0 0.0
      %557 = vmatpush1.msra.mxu0 0.0
      %558 = vmatprep.subr.mxu0 0.0
      %559 = vmatpush1.msra.mxu0 0.0
      %560 = vmatprep.subr.mxu0 0.0
      %561 = vmatpush1.msra.mxu0 0.0
      %562 = vmatprep.subr.mxu0 0.0
      %563 = vmatpush1.msra.mxu0 0.0
      %564 = vmatprep.subr.mxu0 0.0
      %565 = vmatpush1.msra.mxu0 0.0
      %566 = vmatprep.subr.mxu0 0.0
      %567 = vmatpush1.msra.mxu0 0.0
      %568 = vmatprep.subr.mxu0 0.0
      %569 = vmatpush1.msra.mxu0 0.0
      %570 = vmatprep.subr.mxu0 0.0
      %571 = vmatpush1.msra.mxu0 0.0
      %572 = vmatprep.subr.mxu0 0.0
      %573 = vmatpush1.msra.mxu0 0.0
      %574 = vmatprep.subr.mxu0 0.0
      %575 = vmatpush1.msra.mxu0 0.0
      %576 = vmatprep.subr.mxu0 0.0
      %577 = vmatpush1.msra.mxu0 0.0
      %578 = vmatprep.subr.mxu0 0.0
      %579 = vmatpush1.msra.mxu0 0.0
      %580 = vmatprep.subr.mxu0 %v548
      %581 = vmatpush1.msra.mxu0 %v546
      %582 = vmatprep.subr.mxu0 0.0
      %583 = vmatpush2.msra.mxu0 0.0
      %584 = vmatprep.subr.mxu0 0.0
      %585 = vmatpush2.msra.mxu0 0.0
      %586 = vmatprep.subr.mxu0 0.0
      %587 = vmatpush2.msra.mxu0 0.0
      %588 = vmatprep.subr.mxu0 0.0
      %589 = vmatpush2.msra.mxu0 0.0
      %590 = vmatprep.subr.mxu0 0.0
      %591 = vmatpush2.msra.mxu0 0.0
      %592 = vmatprep.subr.mxu0 0.0
      %593 = vmatpush2.msra.mxu0 0.0
      %594 = vmatprep.subr.mxu0 0.0
      %595 = vmatpush2.msra.mxu0 0.0
      %596 = vmatprep.subr.mxu0 0.0
      %597 = vmatpush2.msra.mxu0 0.0
      %598 = vmatprep.subr.mxu0 0.0
      %599 = vmatpush2.msra.mxu0 0.0
      %600 = vmatprep.subr.mxu0 0.0
      %601 = vmatpush2.msra.mxu0 0.0
      %602 = vmatprep.subr.mxu0 0.0
      %603 = vmatpush2.msra.mxu0 0.0
      %604 = vmatprep.subr.mxu0 0.0
      %605 = vmatpush2.msra.mxu0 0.0
      %606 = vmatprep.subr.mxu0 0.0
      %607 = vmatpush2.msra.mxu0 0.0
      %608 = vmatprep.subr.mxu0 0.0
      %609 = vmatpush2.msra.mxu0 0.0
      %610 = vmatprep.subr.mxu0 0.0
      %611 = vmatpush2.msra.mxu0 0.0
      %612 = vmatprep.subr.mxu0 0.0
      %613 = vmatpush2.msra.mxu0 0.0
      %614 = vmatprep.mubr.f32.mxu0 0.0
      %615 = vmatmul.mubr.f32.gmra.mxu0 %v538
      %v616 = vpop.f32.mrf.mxu0
      %v617 = vadd.f32 %v518, %v616
      %v618 = vpop.f32.mrf.mxu0
      %v619 = vadd.f32 %v520, %v618
      %620 = vmatprep.mubr.f32.mxu0 0.0
      %621 = vmatmul.mubr.f32.gmra.mxu0 %v541
      %v622 = vpop.f32.mrf.mxu0
      %v623 = vadd.f32 %v524, %v622
      %v624 = vpop.f32.mrf.mxu0
      %v625 = vadd.f32 %v526, %v624
      %626 = vmatprep.mubr.f32.mxu0 0.0
      %627 = vmatmul.mubr.f32.gmra.mxu0 %v544
      %v628 = vpop.f32.mrf.mxu0
      %v629 = vadd.f32 %v530, %v628
      %v630 = vpop.f32.mrf.mxu0
      %v631 = vadd.f32 %v532, %v630
      %632 = vdwg.mxu0
      %v633 = vld [vmem:[%s5] sm:$0xff]
      %v634 = vld [vmem:[%s5 + $0x8] sm:$0xff]
      %v635 = vld [vmem:[%s5 + $0x10] sm:$0x7]
      %637 = vset.pattern.permute.xlu0 0
      %638 = vperm.xlu0 %637, %v633
      %v639 = vpop.permute.xlu0 %638
      %642 = vset.pattern.permute.xlu0 0
      %643 = vperm.xlu0 %642, %v634
      %v644 = vpop.permute.xlu0 %643
      %647 = vset.pattern.permute.xlu0 0
      %648 = vperm.xlu0 %647, %v635
      %v649 = vpop.permute.xlu0 %648
      %v653 = vmul.f32 %v639, %v406
      %v654 = vmul.f32 %v639, %v410
      %v655 = vmul.f32 %v644, %v406
      %v656 = vmul.f32 %v644, %v410
      %v657 = vmul.f32 %v649, %v406
      %v658 = vmul.f32 %v649, %v410
      %v659 = vadd.f32 %v617, %v653
      %v660 = vadd.f32 %v619, %v654
      %v661 = vadd.f32 %v623, %v655
      %v662 = vadd.f32 %v625, %v656
      %v663 = vadd.f32 %v629, %v657
      %v664 = vadd.f32 %v631, %v658
      %v665 = vld [vmem:[%s6] sm:$0xff]
      %v666 = vld [vmem:[%s6 + $0x8] sm:$0xff]
      %v667 = vld [vmem:[%s6 + $0x10] sm:$0x7]
      %669 = vset.pattern.permute.xlu0 0
      %670 = vperm.xlu0 %669, %v665
      %v671 = vpop.permute.xlu0 %670
      %674 = vset.pattern.permute.xlu0 0
      %675 = vperm.xlu0 %674, %v666
      %v676 = vpop.permute.xlu0 %675
      %679 = vset.pattern.permute.xlu0 0
      %680 = vperm.xlu0 %679, %v667
      %v681 = vpop.permute.xlu0 %680
      %v683 = vadd.f32 %v659, %v671
      %v684 = vadd.f32 %v660, %v671
      %v685 = vadd.f32 %v661, %v676
      %v686 = vadd.f32 %v662, %v676
      %v687 = vadd.f32 %v663, %v681
      %v688 = vadd.f32 %v664, %v681
      %v689 = vxor.u32 %v683, 2147483648
      %v690 = vxor.u32 %v684, 2147483648
      %v691 = vxor.u32 %v685, 2147483648
      %v692 = vxor.u32 %v686, 2147483648
      %v693 = vxor.u32 %v687, 2147483648
      %v694 = vxor.u32 %v688, 2147483648
      %v695 = vmul.f32 %v689, 1.442695
      %v696 = vpow.pop %v695
      %v697 = vmul.f32 %v690, 1.442695
      %v698 = vpow.pop %v697
      %v699 = vmul.f32 %v691, 1.442695
      %v700 = vpow.pop %v699
      %v701 = vmul.f32 %v692, 1.442695
      %v702 = vpow.pop %v701
      %v703 = vmul.f32 %v693, 1.442695
      %v704 = vpow.pop %v703
      %v705 = vmul.f32 %v694, 1.442695
      %v706 = vpow.pop %v705
      %v707 = vadd.f32 %v696, 1.0
      %v708 = vadd.f32 %v698, 1.0
      %v709 = vadd.f32 %v700, 1.0
      %v710 = vadd.f32 %v702, 1.0
      %v711 = vadd.f32 %v704, 1.0
      %v712 = vadd.f32 %v706, 1.0
      %v713 = vrcp.pop %v707
      %v714 = vmul.f32 1.0, %v713
      %v715 = vrcp.pop %v708
      %v716 = vmul.f32 1.0, %v715
      %v717 = vrcp.pop %v709
      %v718 = vmul.f32 1.0, %v717
      %v719 = vrcp.pop %v710
      %v720 = vmul.f32 1.0, %v719
      %v721 = vrcp.pop %v711
      %v722 = vmul.f32 1.0, %v721
      %v723 = vrcp.pop %v712
      %v724 = vmul.f32 1.0, %v723
      %725 = vst [vmem:[%s385] sm:$0xff] %v714
      %726 = vst [vmem:[%s385 + $0x8] sm:$0xff] %v716
      %727 = vst [vmem:[%s385 + $0x10] sm:$0xff] %v718
      %728 = vst [vmem:[%s385 + $0x18] sm:$0xff] %v720
      %729 = vst [vmem:[%s385 + $0x20] sm:$0x7] %v722
      %730 = vst [vmem:[%s385 + $0x28] sm:$0x7] %v724
      %s731 = smul.u32 2, %s23
      %p732 = scmp.lt.s32.totalorder %s22, 1
      %s733 = scalar_select %p732, %s22, 1
      %p734 = scmp.lt.s32.totalorder %s731, 1
      %s735 = scalar_select %p734, %s731, 1
      %s736 = smul.addr %s733, 6
      %s737 = sadd.s32 %s735, %s736
      %s738 = smul.addr %s737, 8
      %s739 = scalar_lea.vmem %s7, %s738
      // Predicated region
      $region49: #{tpu_custom_call.1} parent=47 // pred_check
        %p740 = pneg %p218
      $region50: #{tpu_custom_call.1} parent=47 // pred_check_branch
        %742 = sbr.rel (%p740) target = $region52
      $region51: #{tpu_custom_call.1} parent=47 // pred_region
        %s743 = smul.u32 2, %s23
      $region52: #{tpu_custom_call.1} parent=47 // pred_fallthru
        _
    $region48: #{tpu_custom_call.1} parent=5 // pred_fallthru
      _
    %p744 = scmp.le.s32.totalorder 2, %s13
    // Predicated region
    $region53: #{tpu_custom_call.1} parent=5 // pred_check
      %p745 = pneg %p744
    $region54: #{tpu_custom_call.1} parent=5 // pred_check_branch
      %747 = sbr.rel (%p745) target = $region56
    $region55: #{tpu_custom_call.1} parent=5 // pred_region
      %s748 = ssub.s32 %s13, 2
      // Predicated region
      $region57: #{tpu_custom_call.1} parent=55 // pred_check
        %p749 = pneg %p224
      $region58: #{tpu_custom_call.1} parent=55 // pred_check_branch
        %751 = sbr.rel (%p749) target = $region60
      $region59: #{tpu_custom_call.1} parent=55 // pred_region
        %s752 = smul.u32 2, %s25
        %p753 = scmp.lt.s32.totalorder %s24, 1
        %s754 = scalar_select %p753, %s24, 1
        %p755 = scmp.lt.s32.totalorder %s752, 1
        %s756 = scalar_select %p755, %s752, 1
        %s757 = smul.addr %s754, 6
        %s758 = sadd.s32 %s756, %s757
        %s759 = smul.addr %s758, 8
        %s760 = scalar_lea.vmem %s7, %s759
      $region60: #{tpu_custom_call.1} parent=55 // pred_fallthru
        _
    $region56: #{tpu_custom_call.1} parent=5 // pred_fallthru
      _
  $region6: #{tpu_custom_call.1} parent=0 // loop_footer
    %s17 = sadd.s32 1, %s13
  $region7: #{tpu_custom_call.1} parent=0 // loop_footer_branch
    %12 = sbr.rel target = $region3
  $region8: #{tpu_custom_call.1} parent=0 // loop_exit
    _

</llo_original>
